<compile_context>
chip_gen: v5e
topology: v5e:2x2
jax: 0.10.0
libtpu: 0.0.40
codegen_flags: <defaults>
</compile_context>

<pallas_src>
import functools

import jax
import jax.numpy as jnp
from jax.experimental import pallas as pl
from jax.experimental.pallas import tpu as pltpu

EPS = 1e-6
_VMEM_SOFT_CAP = 56 << 20    # stay safely below v7x's 64 MiB physical per-core VMEM
_VMEM_HEADROOM = 8 << 20     # Mosaic internal scratch / spill headroom


# ---------------------------------------------------------------------------
# Layernorm helpers
# ---------------------------------------------------------------------------

def _layernorm_fused(z, w, b):
    """One-pass LayerNorm over last axis (biased var, eps=1e-6) with the affine scale folded
    into the rsqrt factor.  NOTE: E[z^2]-E[z]^2 is slightly less stable than the two-pass
    form; acceptable for normalized DiT-scale activations."""
    mu = jnp.mean(z, axis=-1, keepdims=True)
    ms = jnp.mean(z * z, axis=-1, keepdims=True)
    var = ms - mu * mu
    inv = jax.lax.rsqrt(var + EPS)
    return (z - mu) * (inv * w) + b


def _layernorm_ref(z, w, b):
    """Two-pass reference LayerNorm matching nn.LayerNorm (eps=1e-6, biased variance)."""
    mu = jnp.mean(z, axis=-1, keepdims=True)
    var = jnp.mean(jnp.square(z - mu), axis=-1, keepdims=True)
    return (z - mu) * jax.lax.rsqrt(var + EPS) * w + b


# ---------------------------------------------------------------------------
# Kernel
# ---------------------------------------------------------------------------

def pre_attention_kernel(
    # per-batch / per-tile inputs
    cshift_ref, cscale_ref, x_ref,
    # grid-invariant parameters
    w_qkv_ref, b_qkv_ref,
    qn_w_ref, qn_b_ref, kn_w_ref, kn_b_ref,
    # outputs
    q_out_ref, k_out_ref, v_out_ref,
):
    D = q_out_ref.shape[-1]

    # --- adaptive LN with the modulate pre-folded into the affine (wrapper computes
    #     cscale = ln_w*(1+scale), cshift = ln_b*(1+scale)+shift per batch row) ---
    x = x_ref[0].astype(jnp.float32)                                   # (TS, D)
    mu = jnp.mean(x, axis=-1, keepdims=True)
    var = jnp.mean(x * x, axis=-1, keepdims=True) - mu * mu
    inv = jax.lax.rsqrt(var + EPS)
    x_mod = (x - mu) * (inv * cscale_ref[0]) + cshift_ref[0]           # (TS, D)

    # --- fused QKV projection: one (TS, D) @ (D, 3D) MXU matmul, f32 accumulation ---
    w = w_qkv_ref[...]
    precision = jax.lax.Precision.HIGHEST if w.dtype == jnp.float32 else None
    qkv = jnp.dot(x_mod.astype(w.dtype), w,
                  preferred_element_type=jnp.float32,
                  precision=precision) + b_qkv_ref[...]                # (TS, 3D)

    q = qkv[:, :D]
    k = qkv[:, D:2 * D]
    v = qkv[:, 2 * D:]

    # --- Q / K layernorms; explicit cast to output dtype on store ---
    q_out_ref[0] = _layernorm_fused(q, qn_w_ref[...], qn_b_ref[...]).astype(q_out_ref.dtype)
    k_out_ref[0] = _layernorm_fused(k, kn_w_ref[...], kn_b_ref[...]).astype(k_out_ref.dtype)
    v_out_ref[0] = v.astype(v_out_ref.dtype)


# ---------------------------------------------------------------------------
# Wrapper helpers
# ---------------------------------------------------------------------------

@functools.lru_cache(maxsize=1)
def _single_buffer_params_supported():
    """Probe ONCE (tiny throwaway kernel) whether pipeline_mode=pl.Buffered(1) lowers and
    runs on this JAX version / backend.  The real kernel is never wrapped in try/except."""
    if not hasattr(pl, "Buffered"):
        return False

    def _copy(a_ref, o_ref):
        o_ref[...] = a_ref[...]

    try:
        fn = pl.pallas_call(
            _copy,
            out_shape=jax.ShapeDtypeStruct((8, 128), jnp.float32),
            grid=(1,),
            in_specs=[pl.BlockSpec((8, 128), lambda i: (0, 0),
                                   pipeline_mode=pl.Buffered(1))],
            out_specs=pl.BlockSpec((8, 128), lambda i: (0, 0)),
        )
        jax.block_until_ready(fn(jnp.zeros((8, 128), jnp.float32)))
        return True
    except Exception:  # narrow: only this probe is guarded
        return False


def _seq_tile_candidates(S, max_tile=512):
    """Multiple-of-8 divisors of S up to max_tile, largest first; fall back to the whole
    sequence (block == full dim satisfies the (8,128) rule) for awkward lengths."""
    cands = [ts for ts in range(8, min(S, max_tile) + 1, 8) if S % ts == 0]
    return sorted(cands, reverse=True) if cands else [S]


def _vmem_estimate(TS, D, x_bytes, w_bytes, out_bytes, n_wbuf):
    """Per-core VMEM footprint estimate (double-buffered tiles + resident params +
    in-kernel f32 intermediates)."""
    return (
        2 * TS * D * x_bytes              # x tile (double-buffered)
        + 3 * 2 * TS * D * out_bytes      # q/k/v output tiles (double-buffered)
        + 2 * 2 * D * 4                   # cshift / cscale (1,1,D) tiles (double-buffered)
        + n_wbuf * D * 3 * D * w_bytes    # fused QKV weight
        + n_wbuf * 8 * D * 4              # b_qkv + q/k LN affines
        + TS * 3 * D * 4                  # (TS, 3D) f32 qkv intermediate
        + 2 * TS * D * 4                  # f32 upcast copies of x / x_mod
    )


# ---------------------------------------------------------------------------
# Wrapper
# ---------------------------------------------------------------------------

def pre_attention_block(x, t, params, *, use_bf16_matmul=True, out_dtype=None, seq_tile=None):
    """PreAttentionBlock forward as a Pallas kernel (grid over batch x sequence tiles)."""
    B, S, D = x.shape
    out_dtype = out_dtype or x.dtype

    # adaLN MLP hoisted out of the kernel (tiny (B,D)@(D,2D) matmul) and the modulate folded
    # into the first LayerNorm affine:
    #   cscale = ln_w * (1 + scale);  cshift = ln_b * (1 + scale) + shift
    t32 = t.astype(jnp.float32)
    silu_t = t32 * jax.nn.sigmoid(t32)
    mods = silu_t @ params["w_ada"].astype(jnp.float32) + params["b_ada"].astype(jnp.float32)
    shift, scale = mods[:, :D], mods[:, D:]
    one_plus = 1.0 + scale                                   # (B, D)
    ln_w = params["ln_w"].astype(jnp.float32)                # (1, D)
    ln_b = params["ln_b"].astype(jnp.float32)                # (1, D)
    cscale = (ln_w * one_plus)[:, None, :]                   # (B, 1, D)
    cshift = (ln_b * one_plus + shift)[:, None, :]           # (B, 1, D)

    # bf16 MXU operands by default (MXU-native on v5e/v6e/v7x); accumulation stays f32 and
    # all LN / elementwise math stays f32 on the VPU.
    w_dtype = jnp.bfloat16 if use_bf16_matmul else jnp.float32
    w_qkv = params["w_qkv"].astype(w_dtype)                  # (D, 3D)
    b_qkv = params["b_qkv"].astype(jnp.float32)              # (1, 3D)

    single_buf = _single_buffer_params_supported()
    n_wbuf = 1 if single_buf else 2
    xb = jnp.dtype(x.dtype).itemsize
    wb = jnp.dtype(w_dtype).itemsize
    ob = jnp.dtype(out_dtype).itemsize

    # Largest seq tile whose VMEM footprint fits the budget (else the smallest candidate).
    candidates = [seq_tile] if seq_tile is not None else _seq_tile_candidates(S)
    TS = candidates[-1]
    for ts in candidates:
        if _vmem_estimate(ts, D, xb, wb, ob, n_wbuf) + _VMEM_HEADROOM <= _VMEM_SOFT_CAP:
            TS = ts
            break
    assert S % TS == 0, f"seq tile {TS} must divide S={S}"
    n_seq = S // TS
    # TODO(synk): for very large D on v7x, also N-tile W_qkv (extra grid axis over the 3D
    # columns) so the resident weight slab stays well under the 64 MiB per-core VMEM.
    # TODO(synk): cross-pallas_call weight prefetch (P10) to hide the W_qkv DMA prologue
    # behind the previous transformer layer.

    vmem_limit = int(min(max(_vmem_estimate(TS, D, xb, wb, ob, n_wbuf) + _VMEM_HEADROOM,
                             32 << 20), _VMEM_SOFT_CAP))

    # Put the larger parallel axis first so v7x's two TensorCores stay balanced.
    seq_first = n_seq >= B
    if seq_first:
        grid = (n_seq, B)
        x_map = lambda s, b: (b, s, 0)
        bvec_map = lambda s, b: (b, 0, 0)
        const_map = lambda s, b: (0, 0)
    else:
        grid = (B, n_seq)
        x_map = lambda b, s: (b, s, 0)
        bvec_map = lambda b, s: (b, 0, 0)
        const_map = lambda b, s: (0, 0)

    def _param_spec(shape):
        # Grid-invariant parameters: single-buffer if supported (constant index_map makes
        # double-buffering pure VMEM waste).
        if single_buf:
            return pl.BlockSpec(shape, const_map, pipeline_mode=pl.Buffered(1))
        return pl.BlockSpec(shape, const_map)

    in_specs = [
        pl.BlockSpec((1, 1, D), bvec_map),           # cshift (per-batch)
        pl.BlockSpec((1, 1, D), bvec_map),           # cscale (per-batch)
        pl.BlockSpec((1, TS, D), x_map),             # x tile
        _param_spec((D, 3 * D)),                     # fused W_qkv
        _param_spec((1, 3 * D)),                     # fused b_qkv
        _param_spec((1, D)), _param_spec((1, D)),    # q_norm affine
        _param_spec((1, D)), _param_spec((1, D)),    # k_norm affine
    ]
    out_spec = pl.BlockSpec((1, TS, D), x_map)
    out_shape = tuple(jax.ShapeDtypeStruct((B, S, D), out_dtype) for _ in range(3))

    call = pl.pallas_call(
        pre_attention_kernel,
        out_shape=out_shape,
        grid_spec=pltpu.PrefetchScalarGridSpec(
            num_scalar_prefetch=0,
            grid=grid,
            in_specs=in_specs,
            out_specs=(out_spec, out_spec, out_spec),
        ),
        compiler_params=pltpu.CompilerParams(
            dimension_semantics=("parallel", "parallel"),
            vmem_limit_bytes=vmem_limit,
        ),
    )
    return call(cshift, cscale, x,
                w_qkv, b_qkv,
                params["qn_w"], params["qn_b"], params["kn_w"], params["kn_b"])


# ---------------------------------------------------------------------------
# Parameters + pure-JAX reference
# ---------------------------------------------------------------------------

def build_params(key, D):
    """Deterministic parameter init mirroring the torch module layouts.

    The PyTorch module zero-inits the adaLN linear and the qkv bias; small random values are
    used here so the kernel compute path is exercised non-trivially.
    """
    ks = jax.random.split(key, 6)
    w_ada = 0.02 * jax.random.normal(ks[0], (2 * D, D), jnp.float32)   # torch (2D, D)
    b_ada = 0.01 * jax.random.normal(ks[1], (2 * D,), jnp.float32)
    w_qkv = 0.02 * jax.random.normal(ks[2], (3 * D, D), jnp.float32)   # torch (3D, D)
    b_qkv = 0.01 * jax.random.normal(ks[3], (3 * D,), jnp.float32)
    ln_w = 1.0 + 0.05 * jax.random.normal(ks[4], (3, D), jnp.float32)
    ln_b = 0.05 * jax.random.normal(ks[5], (3, D), jnp.float32)

    return {
        # (D, 2D): columns [:D] = shift, [D:] = scale — matches torch.chunk(2, dim=-1).
        "w_ada": w_ada.T,
        "b_ada": b_ada,
        # adaLN's inner LayerNorm affine
        "ln_w": ln_w[0].reshape(1, D),
        "ln_b": ln_b[0].reshape(1, D),
        # (D, 3D): columns [:D] = q, [D:2D] = k, [2D:] = v — matches torch.chunk(3, dim=-1).
        "w_qkv": w_qkv.T,
        "b_qkv": b_qkv.reshape(1, 3 * D),
        # q_norm / k_norm affine
        "qn_w": ln_w[1].reshape(1, D), "qn_b": ln_b[1].reshape(1, D),
        "kn_w": ln_w[2].reshape(1, D), "kn_b": ln_b[2].reshape(1, D),
    }


def reference_forward(x, t, p):
    """Pure-JAX reference matching the PyTorch forward exactly (f32 throughout)."""
    D = x.shape[-1]
    silu_t = t * jax.nn.sigmoid(t)
    mods = silu_t @ p["w_ada"] + p["b_ada"]               # (B, 2D)
    shift, scale = mods[:, :D], mods[:, D:]
    x_ln = _layernorm_ref(x, p["ln_w"][0], p["ln_b"][0])
    x_mod = x_ln * (1.0 + scale[:, None, :]) + shift[:, None, :]
    qkv = x_mod @ p["w_qkv"] + p["b_qkv"]
    q, k, v = jnp.split(qkv, 3, axis=-1)
    q = _layernorm_ref(q, p["qn_w"][0], p["qn_b"][0])
    k = _layernorm_ref(k, p["kn_w"][0], p["kn_b"][0])
    return q, k, v


# ---------------------------------------------------------------------------
# Self-test
# ---------------------------------------------------------------------------

if __name__ == "__main__":
    B, S, D = 2, 16, 128   # x: [batch, seq, features], t: [batch, features]

    key = jax.random.PRNGKey(0)
    kx, kt, kp = jax.random.split(key, 3)
    x = jax.random.normal(kx, (B, S, D), jnp.float32)
    t = jax.random.normal(kt, (B, D), jnp.float32)
    params = build_params(kp, D)

    q_ref, k_ref, v_ref = reference_forward(x, t, params)

    # Default path: bf16 MXU operands, f32 outputs (looser tolerance for the bf16 cast).
    q, k, v = pre_attention_block(x, t, params)
    jax.block_until_ready((q, k, v))
    for got, ref in ((q, q_ref), (k, k_ref), (v, v_ref)):
        err = float(jnp.max(jnp.abs(got - ref)))
        assert jnp.allclose(got, ref, atol=5e-2, rtol=5e-2), err

    # Full-precision path (f32 MXU operands, precision=HIGHEST): tight tolerance.
    qf, kf, vf = pre_attention_block(x, t, params, use_bf16_matmul=False)
    jax.block_until_ready((qf, kf, vf))
    for got, ref in ((qf, q_ref), (kf, k_ref), (vf, v_ref)):
        err = float(jnp.max(jnp.abs(got - ref)))
        assert jnp.allclose(got, ref, atol=3e-3, rtol=3e-3), err

    print("KERNEL_OK")
</pallas_src>

<mosaic_0001>
module attributes {stable_mosaic.version = 11 : i64} {
  func.func @_copy(%arg0: i32, %arg1: memref<8x128xf32, #tpu.memory_space<vmem>>, %arg2: memref<8x128xf32, #tpu.memory_space<vmem>>) attributes {dimension_semantics = [#tpu.dimension_semantics<arbitrary>], iteration_bounds = array<i64: 1>, scalar_prefetch = 0 : i64, scratch_operands = 0 : i64, tpu.core_type = #tpu.core_type<tc>, window_params = [{pipeline_mode = #tpu.pipeline_mode<synchronous>, transform_indices = @transform_0, window_bounds = array<i64: 8, 128>}, {pipeline_mode = #tpu.pipeline_mode<synchronous>, transform_indices = @transform_1, window_bounds = array<i64: 8, 128>}]} {
    %c0 = arith.constant 0 : index
    %c0_0 = arith.constant 0 : index
    %0 = vector.load %arg1[%c0, %c0_0] : memref<8x128xf32, #tpu.memory_space<vmem>>, vector<8x128xf32>
    %c0_1 = arith.constant 0 : index
    %c0_2 = arith.constant 0 : index
    %1 = vector.load %arg2[%c0_1, %c0_2] : memref<8x128xf32, #tpu.memory_space<vmem>>, vector<8x128xf32>
    tpu.vector_store %arg2[%c0_1, %c0_2], %0 {strides = array<i32>} : memref<8x128xf32, #tpu.memory_space<vmem>>, vector<8x128xf32>,
    return
  }
  func.func @transform_0(%arg0: i32) -> (i32, i32) {
    %c0_i32 = arith.constant 0 : i32
    %c0_i32_0 = arith.constant 0 : i32
    %c0_i32_1 = arith.constant 0 : i32
    return %c0_i32, %c0_i32_0 : i32, i32
  }
  func.func @transform_1(%arg0: i32) -> (i32, i32) {
    %c0_i32 = arith.constant 0 : i32
    %c0_i32_0 = arith.constant 0 : i32
    %c0_i32_1 = arith.constant 0 : i32
    return %c0_i32, %c0_i32_0 : i32, i32
  }
}

module attributes {stable_mosaic.version = 11 : i64} {
  func.func @pre_attention_kernel(%arg0: i32, %arg1: i32, %arg2: memref<1x1x128xf32, #tpu.memory_space<vmem>>, %arg3: memref<1x1x128xf32, #tpu.memory_space<vmem>>, %arg4: memref<1x16x128xf32, #tpu.memory_space<vmem>>, %arg5: memref<128x384xbf16, #tpu.memory_space<vmem>>, %arg6: memref<1x384xf32, #tpu.memory_space<vmem>>, %arg7: memref<1x128xf32, #tpu.memory_space<vmem>>, %arg8: memref<1x128xf32, #tpu.memory_space<vmem>>, %arg9: memref<1x128xf32, #tpu.memory_space<vmem>>, %arg10: memref<1x128xf32, #tpu.memory_space<vmem>>, %arg11: memref<1x16x128xf32, #tpu.memory_space<vmem>>, %arg12: memref<1x16x128xf32, #tpu.memory_space<vmem>>, %arg13: memref<1x16x128xf32, #tpu.memory_space<vmem>>) attributes {dimension_semantics = [#tpu.dimension_semantics<parallel>, #tpu.dimension_semantics<parallel>], iteration_bounds = array<i64: 2, 1>, scalar_prefetch = 0 : i64, scratch_operands = 0 : i64, tpu.core_type = #tpu.core_type<tc>, window_params = [{transform_indices = @transform_0, window_bounds = array<i64: 1, 1, 128>}, {transform_indices = @transform_1, window_bounds = array<i64: 1, 1, 128>}, {transform_indices = @transform_2, window_bounds = array<i64: 1, 16, 128>}, {pipeline_mode = #tpu.pipeline_mode<synchronous>, transform_indices = @transform_3, window_bounds = array<i64: 128, 384>}, {pipeline_mode = #tpu.pipeline_mode<synchronous>, transform_indices = @transform_4, window_bounds = array<i64: 1, 384>}, {pipeline_mode = #tpu.pipeline_mode<synchronous>, transform_indices = @transform_5, window_bounds = array<i64: 1, 128>}, {pipeline_mode = #tpu.pipeline_mode<synchronous>, transform_indices = @transform_6, window_bounds = array<i64: 1, 128>}, {pipeline_mode = #tpu.pipeline_mode<synchronous>, transform_indices = @transform_7, window_bounds = array<i64: 1, 128>}, {pipeline_mode = #tpu.pipeline_mode<synchronous>, transform_indices = @transform_8, window_bounds = array<i64: 1, 128>}, {transform_indices = @transform_9, window_bounds = array<i64: 1, 16, 128>}, {transform_indices = @transform_10, window_bounds = array<i64: 1, 16, 128>}, {transform_indices = @transform_11, window_bounds = array<i64: 1, 16, 128>}]} {
    %c0 = arith.constant 0 : index
    %c0_0 = arith.constant 0 : index
    %c0_1 = arith.constant 0 : index
    %0 = vector.load %arg4[%c0, %c0_0, %c0_1] : memref<1x16x128xf32, #tpu.memory_space<vmem>>, vector<1x16x128xf32>
    %1 = vector.shape_cast %0 : vector<1x16x128xf32> to vector<16x128xf32>
    %cst = arith.constant dense<0.000000e+00> : vector<16xf32>
    %2 = vector.multi_reduction <add>, %1, %cst [1] : vector<16x128xf32> to vector<16xf32>
    %3 = vector.shape_cast %2 : vector<16xf32> to vector<16x1xf32>
    %cst_2 = arith.constant 1.280000e+02 : f32
    %4 = vector.broadcast %cst_2 : f32 to vector<16x1xf32>
    %5 = arith.divf %3, %4 : vector<16x1xf32>
    %6 = arith.mulf %1, %1 : vector<16x128xf32>
    %cst_3 = arith.constant dense<0.000000e+00> : vector<16xf32>
    %7 = vector.multi_reduction <add>, %6, %cst_3 [1] : vector<16x128xf32> to vector<16xf32>
    %8 = vector.shape_cast %7 : vector<16xf32> to vector<16x1xf32>
    %cst_4 = arith.constant 1.280000e+02 : f32
    %9 = vector.broadcast %cst_4 : f32 to vector<16x1xf32>
    %10 = arith.divf %8, %9 : vector<16x1xf32>
    %11 = arith.mulf %5, %5 : vector<16x1xf32>
    %12 = arith.subf %10, %11 : vector<16x1xf32>
    %cst_5 = arith.constant 9.99999997E-7 : f32
    %13 = vector.broadcast %cst_5 : f32 to vector<16x1xf32>
    %14 = arith.addf %12, %13 : vector<16x1xf32>
    %15 = math.rsqrt %14 : vector<16x1xf32>
    %16 = vector.broadcast %5 : vector<16x1xf32> to vector<16x128xf32>
    %17 = arith.subf %1, %16 : vector<16x128xf32>
    %c0_6 = arith.constant 0 : index
    %c0_7 = arith.constant 0 : index
    %c0_8 = arith.constant 0 : index
    %18 = vector.load %arg3[%c0_6, %c0_7, %c0_8] : memref<1x1x128xf32, #tpu.memory_space<vmem>>, vector<1x1x128xf32>
    %19 = vector.shape_cast %18 : vector<1x1x128xf32> to vector<1x128xf32>
    %20 = vector.broadcast %15 : vector<16x1xf32> to vector<16x128xf32>
    %21 = vector.broadcast %19 : vector<1x128xf32> to vector<16x128xf32>
    %22 = arith.mulf %20, %21 : vector<16x128xf32>
    %23 = arith.mulf %17, %22 : vector<16x128xf32>
    %c0_9 = arith.constant 0 : index
    %c0_10 = arith.constant 0 : index
    %c0_11 = arith.constant 0 : index
    %24 = vector.load %arg2[%c0_9, %c0_10, %c0_11] : memref<1x1x128xf32, #tpu.memory_space<vmem>>, vector<1x1x128xf32>
    %25 = vector.shape_cast %24 : vector<1x1x128xf32> to vector<1x128xf32>
    %26 = vector.broadcast %25 : vector<1x128xf32> to vector<16x128xf32>
    %27 = arith.addf %23, %26 : vector<16x128xf32>
    %c0_12 = arith.constant 0 : index
    %c0_13 = arith.constant 0 : index
    %28 = vector.load %arg5[%c0_12, %c0_13] : memref<128x384xbf16, #tpu.memory_space<vmem>>, vector<128x384xbf16>
    %29 = arith.truncf %27 : vector<16x128xf32> to vector<16x128xbf16>
    %cst_14 = arith.constant dense<0.000000e+00> : vector<16x384xf32>
    %30 = tpu.matmul %29, %28, %cst_14 {dimension_numbers = #tpu.dot_dimension_numbers<[1], [0], [0], [1], [0, 0, 1, 1], [], []>} : vector<16x128xbf16>, vector<128x384xbf16>, vector<16x384xf32> -> vector<16x384xf32>
    %c0_15 = arith.constant 0 : index
    %c0_16 = arith.constant 0 : index
    %31 = vector.load %arg6[%c0_15, %c0_16] : memref<1x384xf32, #tpu.memory_space<vmem>>, vector<1x384xf32>
    %32 = vector.broadcast %31 : vector<1x384xf32> to vector<16x384xf32>
    %33 = arith.addf %30, %32 : vector<16x384xf32>
    %34 = vector.extract_strided_slice %33 {offsets = [0, 0], sizes = [16, 128], strides = [1, 1]} : vector<16x384xf32> to vector<16x128xf32>
    %35 = vector.extract_strided_slice %33 {offsets = [0, 128], sizes = [16, 128], strides = [1, 1]} : vector<16x384xf32> to vector<16x128xf32>
    %36 = vector.extract_strided_slice %33 {offsets = [0, 256], sizes = [16, 128], strides = [1, 1]} : vector<16x384xf32> to vector<16x128xf32>
    %c0_17 = arith.constant 0 : index
    %c0_18 = arith.constant 0 : index
    %37 = vector.load %arg7[%c0_17, %c0_18] : memref<1x128xf32, #tpu.memory_space<vmem>>, vector<1x128xf32>
    %c0_19 = arith.constant 0 : index
    %c0_20 = arith.constant 0 : index
    %38 = vector.load %arg8[%c0_19, %c0_20] : memref<1x128xf32, #tpu.memory_space<vmem>>, vector<1x128xf32>
    %cst_21 = arith.constant dense<0.000000e+00> : vector<16xf32>
    %39 = vector.multi_reduction <add>, %34, %cst_21 [1] : vector<16x128xf32> to vector<16xf32>
    %40 = vector.shape_cast %39 : vector<16xf32> to vector<16x1xf32>
    %cst_22 = arith.constant 1.280000e+02 : f32
    %41 = vector.broadcast %cst_22 : f32 to vector<16x1xf32>
    %42 = arith.divf %40, %41 : vector<16x1xf32>
    %43 = arith.mulf %34, %34 : vector<16x128xf32>
    %cst_23 = arith.constant dense<0.000000e+00> : vector<16xf32>
    %44 = vector.multi_reduction <add>, %43, %cst_23 [1] : vector<16x128xf32> to vector<16xf32>
    %45 = vector.shape_cast %44 : vector<16xf32> to vector<16x1xf32>
    %cst_24 = arith.constant 1.280000e+02 : f32
    %46 = vector.broadcast %cst_24 : f32 to vector<16x1xf32>
    %47 = arith.divf %45, %46 : vector<16x1xf32>
    %48 = arith.mulf %42, %42 : vector<16x1xf32>
    %49 = arith.subf %47, %48 : vector<16x1xf32>
    %cst_25 = arith.constant 9.99999997E-7 : f32
    %50 = vector.broadcast %cst_25 : f32 to vector<16x1xf32>
    %51 = arith.addf %49, %50 : vector<16x1xf32>
    %52 = math.rsqrt %51 : vector<16x1xf32>
    %53 = vector.broadcast %42 : vector<16x1xf32> to vector<16x128xf32>
    %54 = arith.subf %34, %53 : vector<16x128xf32>
    %55 = vector.broadcast %52 : vector<16x1xf32> to vector<16x128xf32>
    %56 = vector.broadcast %37 : vector<1x128xf32> to vector<16x128xf32>
    %57 = arith.mulf %55, %56 : vector<16x128xf32>
    %58 = arith.mulf %54, %57 : vector<16x128xf32>
    %59 = vector.broadcast %38 : vector<1x128xf32> to vector<16x128xf32>
    %60 = arith.addf %58, %59 : vector<16x128xf32>
    %c0_26 = arith.constant 0 : index
    %c0_27 = arith.constant 0 : index
    %c0_28 = arith.constant 0 : index
    %61 = vector.load %arg11[%c0_26, %c0_27, %c0_28] : memref<1x16x128xf32, #tpu.memory_space<vmem>>, vector<1x16x128xf32>
    %62 = vector.shape_cast %61 : vector<1x16x128xf32> to vector<16x128xf32>
    %63 = vector.shape_cast %60 : vector<16x128xf32> to vector<1x16x128xf32>
    tpu.vector_store %arg11[%c0_26, %c0_27, %c0_28], %63 {strides = array<i32>} : memref<1x16x128xf32, #tpu.memory_space<vmem>>, vector<1x16x128xf32>,
    %c0_29 = arith.constant 0 : index
    %c0_30 = arith.constant 0 : index
    %64 = vector.load %arg9[%c0_29, %c0_30] : memref<1x128xf32, #tpu.memory_space<vmem>>, vector<1x128xf32>
    %c0_31 = arith.constant 0 : index
    %c0_32 = arith.constant 0 : index
    %65 = vector.load %arg10[%c0_31, %c0_32] : memref<1x128xf32, #tpu.memory_space<vmem>>, vector<1x128xf32>
    %cst_33 = arith.constant dense<0.000000e+00> : vector<16xf32>
    %66 = vector.multi_reduction <add>, %35, %cst_33 [1] : vector<16x128xf32> to vector<16xf32>
    %67 = vector.shape_cast %66 : vector<16xf32> to vector<16x1xf32>
    %cst_34 = arith.constant 1.280000e+02 : f32
    %68 = vector.broadcast %cst_34 : f32 to vector<16x1xf32>
    %69 = arith.divf %67, %68 : vector<16x1xf32>
    %70 = arith.mulf %35, %35 : vector<16x128xf32>
    %cst_35 = arith.constant dense<0.000000e+00> : vector<16xf32>
    %71 = vector.multi_reduction <add>, %70, %cst_35 [1] : vector<16x128xf32> to vector<16xf32>
    %72 = vector.shape_cast %71 : vector<16xf32> to vector<16x1xf32>
    %cst_36 = arith.constant 1.280000e+02 : f32
    %73 = vector.broadcast %cst_36 : f32 to vector<16x1xf32>
    %74 = arith.divf %72, %73 : vector<16x1xf32>
    %75 = arith.mulf %69, %69 : vector<16x1xf32>
    %76 = arith.subf %74, %75 : vector<16x1xf32>
    %cst_37 = arith.constant 9.99999997E-7 : f32
    %77 = vector.broadcast %cst_37 : f32 to vector<16x1xf32>
    %78 = arith.addf %76, %77 : vector<16x1xf32>
    %79 = math.rsqrt %78 : vector<16x1xf32>
    %80 = vector.broadcast %69 : vector<16x1xf32> to vector<16x128xf32>
    %81 = arith.subf %35, %80 : vector<16x128xf32>
    %82 = vector.broadcast %79 : vector<16x1xf32> to vector<16x128xf32>
    %83 = vector.broadcast %64 : vector<1x128xf32> to vector<16x128xf32>
    %84 = arith.mulf %82, %83 : vector<16x128xf32>
    %85 = arith.mulf %81, %84 : vector<16x128xf32>
    %86 = vector.broadcast %65 : vector<1x128xf32> to vector<16x128xf32>
    %87 = arith.addf %85, %86 : vector<16x128xf32>
    %c0_38 = arith.constant 0 : index
    %c0_39 = arith.constant 0 : index
    %c0_40 = arith.constant 0 : index
    %88 = vector.load %arg12[%c0_38, %c0_39, %c0_40] : memref<1x16x128xf32, #tpu.memory_space<vmem>>, vector<1x16x128xf32>
    %89 = vector.shape_cast %88 : vector<1x16x128xf32> to vector<16x128xf32>
    %90 = vector.shape_cast %87 : vector<16x128xf32> to vector<1x16x128xf32>
    tpu.vector_store %arg12[%c0_38, %c0_39, %c0_40], %90 {strides = array<i32>} : memref<1x16x128xf32, #tpu.memory_space<vmem>>, vector<1x16x128xf32>,
    %c0_41 = arith.constant 0 : index
    %c0_42 = arith.constant 0 : index
    %c0_43 = arith.constant 0 : index
    %91 = vector.load %arg13[%c0_41, %c0_42, %c0_43] : memref<1x16x128xf32, #tpu.memory_space<vmem>>, vector<1x16x128xf32>
    %92 = vector.shape_cast %91 : vector<1x16x128xf32> to vector<16x128xf32>
    %93 = vector.shape_cast %36 : vector<16x128xf32> to vector<1x16x128xf32>
    tpu.vector_store %arg13[%c0_41, %c0_42, %c0_43], %93 {strides = array<i32>} : memref<1x16x128xf32, #tpu.memory_space<vmem>>, vector<1x16x128xf32>,
    return
  }
  func.func @transform_0(%arg0: i32, %arg1: i32) -> (i32, i32, i32) {
    %c0_i32 = arith.constant 0 : i32
    %c0_i32_0 = arith.constant 0 : i32
    %c0_i32_1 = arith.constant 0 : i32
    return %arg0, %c0_i32, %c0_i32_0 : i32, i32, i32
  }
  func.func @transform_1(%arg0: i32, %arg1: i32) -> (i32, i32, i32) {
    %c0_i32 = arith.constant 0 : i32
    %c0_i32_0 = arith.constant 0 : i32
    %c0_i32_1 = arith.constant 0 : i32
    return %arg0, %c0_i32, %c0_i32_0 : i32, i32, i32
  }
  func.func @transform_2(%arg0: i32, %arg1: i32) -> (i32, i32, i32) {
    %c0_i32 = arith.constant 0 : i32
    %c0_i32_0 = arith.constant 0 : i32
    return %arg0, %arg1, %c0_i32 : i32, i32, i32
  }
  func.func @transform_3(%arg0: i32, %arg1: i32) -> (i32, i32) {
    %c0_i32 = arith.constant 0 : i32
    %c0_i32_0 = arith.constant 0 : i32
    %c0_i32_1 = arith.constant 0 : i32
    return %c0_i32, %c0_i32_0 : i32, i32
  }
  func.func @transform_4(%arg0: i32, %arg1: i32) -> (i32, i32) {
    %c0_i32 = arith.constant 0 : i32
    %c0_i32_0 = arith.constant 0 : i32
    %c0_i32_1 = arith.constant 0 : i32
    return %c0_i32, %c0_i32_0 : i32, i32
  }
  func.func @transform_5(%arg0: i32, %arg1: i32) -> (i32, i32) {
    %c0_i32 = arith.constant 0 : i32
    %c0_i32_0 = arith.constant 0 : i32
    %c0_i32_1 = arith.constant 0 : i32
    return %c0_i32, %c0_i32_0 : i32, i32
  }
  func.func @transform_6(%arg0: i32, %arg1: i32) -> (i32, i32) {
    %c0_i32 = arith.constant 0 : i32
    %c0_i32_0 = arith.constant 0 : i32
    %c0_i32_1 = arith.constant 0 : i32
    return %c0_i32, %c0_i32_0 : i32, i32
  }
  func.func @transform_7(%arg0: i32, %arg1: i32) -> (i32, i32) {
    %c0_i32 = arith.constant 0 : i32
    %c0_i32_0 = arith.constant 0 : i32
    %c0_i32_1 = arith.constant 0 : i32
    return %c0_i32, %c0_i32_0 : i32, i32
  }
  func.func @transform_8(%arg0: i32, %arg1: i32) -> (i32, i32) {
    %c0_i32 = arith.constant 0 : i32
    %c0_i32_0 = arith.constant 0 : i32
    %c0_i32_1 = arith.constant 0 : i32
    return %c0_i32, %c0_i32_0 : i32, i32
  }
  func.func @transform_9(%arg0: i32, %arg1: i32) -> (i32, i32, i32) {
    %c0_i32 = arith.constant 0 : i32
    %c0_i32_0 = arith.constant 0 : i32
    return %arg0, %arg1, %c0_i32 : i32, i32, i32
  }
  func.func @transform_10(%arg0: i32, %arg1: i32) -> (i32, i32, i32) {
    %c0_i32 = arith.constant 0 : i32
    %c0_i32_0 = arith.constant 0 : i32
    return %arg0, %arg1, %c0_i32 : i32, i32, i32
  }
  func.func @transform_11(%arg0: i32, %arg1: i32) -> (i32, i32, i32) {
    %c0_i32 = arith.constant 0 : i32
    %c0_i32_0 = arith.constant 0 : i32
    return %arg0, %arg1, %c0_i32 : i32, i32, i32
  }
}

</mosaic_0001>

<llo_original>
// kernel: tpu_custom_call.1
$region0: #{tpu_custom_call.1}
  #allocation0 [shape = 'u32[]', space=smem, size = 0x4, offset = 0x4, fixed_abs, tag = 'smem constant byte address 0x4 - core index']
  #allocation1 [shape = 'u32[72,128]{1,0:T(1,128)}', space=vmem, size = 0x9000, scoped, tag = 'internal scratch']
  %s0 = inlined_call_operand.hbm [shape: f32[8,128], index: 0, kind: input, shape index: {}]
  %s1 = inlined_call_operand.hbm [shape: f32[8,128], index: 1, kind: output, shape index: {}]
  %s2 = sld [smem:[#allocation0]]
  $region18: #{tpu_custom_call.1} parent=0
    _
  %s4 = ssub.s32 1, %s2
  %s5 = scalar_select 0, %s4, %s2
  $region1: #{tpu_custom_call.1} parent=0
    #allocation2 [shape = 'u8[4096]{0}', space=vmem, size = 0x1000, scoped, tag = 'input window, operand 0, single buffered']
    #allocation3 [shape = 's32[1]{0}', space=sflag, size = 0x4, scoped, tag = 'scoped memory for tpu_custom_call.1']
    #allocation4 [shape = 's32[1]{0}', space=sflag, size = 0x4, scoped, tag = 'scoped memory for tpu_custom_call.1']
    #allocation5 [shape = 'u8[4096]{0}', space=vmem, size = 0x1000, scoped, tag = 'output window, operand 0, single buffered']
    %6 = vsyncpa [#allocation3], 0
    %7 = vsyncpa [#allocation4], 0
    // Predicated region
    $region2: #{tpu_custom_call.1} parent=1 // pred_check
      _
    $region3: #{tpu_custom_call.1} parent=1 // pred_check_branch
      %9 = sbr.rel (0) target = $region5
    $region4: #{tpu_custom_call.1} parent=1 // pred_region
      %11 = vsyncadd [#allocation3], 0
      %s13 = sshll.u32 %s0, 4
      %s14 = int_to_ptr.hbm [resolvable:$true] %s13
      %s15 = sshll.u32 [#allocation2], 4
      %s16 = int_to_ptr.vmem [resolvable:$true] %s15
      %18 = dma.hbm_to_vmem [thread:$0]  %s14, 128, %s16, [#allocation3]
    $region5: #{tpu_custom_call.1} parent=1 // pred_fallthru
      _
    // Predicated region
    $region6: #{tpu_custom_call.1} parent=1 // pred_check
      _
    $region7: #{tpu_custom_call.1} parent=1 // pred_check_branch
      %20 = sbr.rel (0) target = $region9
    $region8: #{tpu_custom_call.1} parent=1 // pred_region
      %22 = dma.done [#allocation3], 128
    $region9: #{tpu_custom_call.1} parent=1 // pred_fallthru
      _
    %v23 = vld [vmem:[#allocation2] sm:$0xff]
    %24 = vst [vmem:[#allocation5] sm:$0xff] %v23
    // Predicated region
    $region10: #{tpu_custom_call.1} parent=1 // pred_check
      _
    $region11: #{tpu_custom_call.1} parent=1 // pred_check_branch
      %26 = sbr.rel (0) target = $region13
    $region12: #{tpu_custom_call.1} parent=1 // pred_region
      %28 = vsyncadd [#allocation4], 0
      %s30 = sshll.u32 [#allocation5], 4
      %s31 = int_to_ptr.vmem [resolvable:$true] %s30
      %s32 = sshll.u32 %s1, 4
      %s33 = int_to_ptr.hbm [resolvable:$true] %s32
      %35 = dma.vmem_to_hbm [thread:$0]  %s31, 128, %s33, [#allocation4]
    $region13: #{tpu_custom_call.1} parent=1 // pred_fallthru
      _
    // Predicated region
    $region14: #{tpu_custom_call.1} parent=1 // pred_check
      _
    $region15: #{tpu_custom_call.1} parent=1 // pred_check_branch
      %37 = sbr.rel (0) target = $region17
    $region16: #{tpu_custom_call.1} parent=1 // pred_region
      %39 = dma.done [#allocation4], 128
    $region17: #{tpu_custom_call.1} parent=1 // pred_fallthru
      _
    %40 = vsyncpa [#allocation3], 1
    %41 = vsyncpa [#allocation4], 1

// kernel: tpu_custom_call.1
$region0: #{tpu_custom_call.1}
  #allocation0 [shape = 'u32[]', space=smem, size = 0x4, offset = 0x4, fixed_abs, tag = 'smem constant byte address 0x4 - core index']
  #allocation1 [shape = 'u32[72,128]{1,0:T(1,128)}', space=vmem, size = 0x9000, scoped, tag = 'internal scratch']
  %s0 = inlined_call_operand.hbm [shape: f32[2,1,128], index: 0, kind: input, shape index: {}]
  %s1 = inlined_call_operand.hbm [shape: f32[2,1,128], index: 1, kind: input, shape index: {}]
  %s2 = inlined_call_operand.hbm [shape: f32[2,16,128], index: 2, kind: input, shape index: {}]
  %s3 = inlined_call_operand.hbm [shape: bf16[128,384], index: 3, kind: input, shape index: {}]
  %s4 = inlined_call_operand.vmem [shape: f32[1,384], index: 4, kind: input, shape index: {}]
  %s5 = inlined_call_operand.vmem [shape: f32[1,128], index: 5, kind: input, shape index: {}]
  %s6 = inlined_call_operand.vmem [shape: f32[1,128], index: 6, kind: input, shape index: {}]
  %s7 = inlined_call_operand.vmem [shape: f32[1,128], index: 7, kind: input, shape index: {}]
  %s8 = inlined_call_operand.vmem [shape: f32[1,128], index: 8, kind: input, shape index: {}]
  %s9 = inlined_call_operand.hbm [shape: f32[2,16,128], index: 9, kind: output, shape index: {0}]
  %s10 = inlined_call_operand.hbm [shape: f32[2,16,128], index: 10, kind: output, shape index: {1}]
  %s11 = inlined_call_operand.hbm [shape: f32[2,16,128], index: 11, kind: output, shape index: {2}]
  %12 = xla_tuple %s9, %s10, %s11
  %s13 = sld [smem:[#allocation0]]
  $region101: #{tpu_custom_call.1} parent=0
    _
  %s15 = ssub.s32 1, %s13
  %s16 = scalar_select 0, %s15, %s13
  $region1: #{tpu_custom_call.1} parent=0
    #allocation2 [shape = 'u8[1024]{0}', space=vmem, size = 0x400, scoped, tag = 'input window, operand 0']
    #allocation3 [shape = 's32[2]{0}', space=sflag, size = 0x8, scoped, tag = 'scoped memory for tpu_custom_call.1']
    #allocation4 [shape = 's32[2]{0}', space=sflag, size = 0x8, scoped, tag = 'scoped memory for tpu_custom_call.1']
    #allocation5 [shape = 'u8[1024]{0}', space=vmem, size = 0x400, scoped, tag = 'input window, operand 1']
    #allocation6 [shape = 's32[2]{0}', space=sflag, size = 0x8, scoped, tag = 'scoped memory for tpu_custom_call.1']
    #allocation7 [shape = 'u8[16384]{0}', space=vmem, size = 0x4000, scoped, tag = 'input window, operand 2']
    #allocation8 [shape = 'u8[98304]{0}', space=vmem, size = 0x18000, scoped, tag = 'input window, operand 3, single buffered']
    #allocation9 [shape = 's32[1]{0}', space=sflag, size = 0x4, scoped, tag = 'scoped memory for tpu_custom_call.1']
    #allocation10 [shape = 'u8[16384]{0}', space=vmem, size = 0x4000, scoped, tag = 'output window, operand 0']
    #allocation11 [shape = 'u8[16384]{0}', space=vmem, size = 0x4000, scoped, tag = 'output window, operand 1']
    #allocation12 [shape = 's32[2]{0}', space=sflag, size = 0x8, scoped, tag = 'scoped memory for tpu_custom_call.1']
    #allocation13 [shape = 'u8[16384]{0}', space=vmem, size = 0x4000, scoped, tag = 'output window, operand 2']
    %17 = vsyncpa [#allocation3], 0
    %s18 = scalar_lea.sflag [#allocation3], 1
    %19 = vsyncpa %s18, 0
    %20 = vsyncpa [#allocation6], 0
    %s21 = scalar_lea.sflag [#allocation6], 1
    %22 = vsyncpa %s21, 0
    %23 = vsyncpa [#allocation9], 0
    %24 = vsyncpa [#allocation4], 0
    %s25 = scalar_lea.sflag [#allocation4], 1
    %26 = vsyncpa %s25, 0
    %27 = vsyncpa [#allocation12], 0
    %s28 = scalar_lea.sflag [#allocation12], 1
    %29 = vsyncpa %s28, 0
    loop: start=0, step=1, limit=4
    $region2: #{tpu_custom_call.1} parent=1 // loop_pre_header
      _
    $region3: #{tpu_custom_call.1} parent=1 // loop_header
      %s31 = sphi 0, %s35
      %p32 = scmp.ge.s32.totalorder %s31, 4
      %s38 = sphi 0, %s50
      %s39 = sphi 0, %s46
      %s40 = sphi 0, %s38
      %s41 = sphi 0, %s39
      %s42 = sphi 0, %s40
      %s43 = sphi 0, %s41
      %s53 = sphi 0, %s55
      %s56 = sphi 0, %s53
      %s57 = sphi 0, %s56
      %s73 = sphi 0, %s57
      %s79 = sphi 0, %s81
      %s82 = sphi 0, %s79
      %s83 = sphi 0, %s82
      %s99 = sphi 0, %s83
      %s107 = sphi 0, %s109
      %s110 = sphi 0, %s107
      %s111 = sphi 0, %s110
      %s127 = sphi 0, %s111
      %s131 = sphi 0, %s131
      %s133 = sphi 0, %s131
      %s134 = sphi 0, %s133
      %s148 = sphi 0, %s134
      %s152 = sphi 0, %s152
      %s154 = sphi 0, %s152
      %s155 = sphi 0, %s154
      %s169 = sphi 0, %s155
      %s173 = sphi 0, %s173
      %s175 = sphi 0, %s173
      %s176 = sphi 0, %s175
      %s190 = sphi 0, %s176
      %s194 = sphi 0, %s194
      %s196 = sphi 0, %s194
      %s197 = sphi 0, %s196
      %s211 = sphi 0, %s197
      %s215 = sphi 0, %s215
      %s217 = sphi 0, %s215
      %s218 = sphi 0, %s217
      %s232 = sphi 0, %s218
      %s236 = sphi 0, %s236
      %s238 = sphi 0, %s236
      %s239 = sphi 0, %s238
      %s253 = sphi 0, %s239
      %s261 = sphi 0, %s263
      %s264 = sphi 0, %s261
      %s265 = sphi 0, %s264
      %s281 = sphi 0, %s265
      %s289 = sphi 0, %s291
      %s292 = sphi 0, %s289
      %s293 = sphi 0, %s292
      %s309 = sphi 0, %s293
      %s317 = sphi 0, %s319
      %s320 = sphi 0, %s317
      %s321 = sphi 0, %s320
      %s337 = sphi 0, %s321
    $region4: #{tpu_custom_call.1} parent=1 // loop_header_branch
      %34 = sbr.rel (%p32) target = $region8
    $region5: #{tpu_custom_call.1} parent=1 // loop_body
      %s36 = ssub.s32 %s31, 1
      %s37 = ssub.s32 %s31, 2
      %s44 = sadd.s32 1, %s39
      %p45 = scmp.ge.s32.totalorder %s44, 1
      %s46 = scalar_select %p45, 0, %s44
      %s47 = sadd.s32 1, %s38
      %s48 = scalar_select %p45, %s47, %s38
      %p49 = scmp.ge.s32.totalorder %s48, 2
      %s50 = scalar_select %p49, 0, %s48
      %s51 = ssub.s32 %s38, %s50
      %p52 = scmp.eq.s32.totalorder %s51, 0
      %s54 = sadd.s32 %s53, 1
      %s55 = scalar_select %p52, %s53, %s54
      %p58 = pneg %p52
      %p59 = scmp.eq.s32.totalorder %s31, 1
      %p60 = por %p58, %p59
      %p61 = scmp.ne.s32.totalorder %s53, %s56
      %p62 = scmp.eq.s32.totalorder %s31, 0
      %p63 = por %p61, %p62
      %p64 = scmp.ne.s32.totalorder %s53, %s56
      %p65 = scmp.eq.s32.totalorder %s36, 1
      %p66 = por %p64, %p65
      %p67 = scmp.ne.s32.totalorder %s56, %s57
      %p68 = scmp.eq.s32.totalorder %s36, 0
      %p69 = por %p67, %p68
      %p70 = scmp.ne.s32.totalorder %s56, %s57
      %p71 = scmp.eq.s32.totalorder %s37, 1
      %p72 = por %p70, %p71
      %p74 = scmp.ne.s32.totalorder %s57, %s73
      %p75 = scmp.eq.s32.totalorder %s37, 0
      %p76 = por %p74, %p75
      %s77 = ssub.s32 %s38, %s50
      %p78 = scmp.eq.s32.totalorder %s77, 0
      %s80 = sadd.s32 %s79, 1
      %s81 = scalar_select %p78, %s79, %s80
      %p84 = pneg %p78
      %p85 = scmp.eq.s32.totalorder %s31, 1
      %p86 = por %p84, %p85
      %p87 = scmp.ne.s32.totalorder %s79, %s82
      %p88 = scmp.eq.s32.totalorder %s31, 0
      %p89 = por %p87, %p88
      %p90 = scmp.ne.s32.totalorder %s79, %s82
      %p91 = scmp.eq.s32.totalorder %s36, 1
      %p92 = por %p90, %p91
      %p93 = scmp.ne.s32.totalorder %s82, %s83
      %p94 = scmp.eq.s32.totalorder %s36, 0
      %p95 = por %p93, %p94
      %p96 = scmp.ne.s32.totalorder %s82, %s83
      %p97 = scmp.eq.s32.totalorder %s37, 1
      %p98 = por %p96, %p97
      %p100 = scmp.ne.s32.totalorder %s83, %s99
      %p101 = scmp.eq.s32.totalorder %s37, 0
      %p102 = por %p100, %p101
      %s103 = ssub.s32 %s38, %s50
      %s104 = ssub.s32 %s39, %s46
      %s105 = sor.u32 %s103, %s104
      %p106 = scmp.eq.s32.totalorder %s105, 0
      %s108 = sadd.s32 %s107, 1
      %s109 = scalar_select %p106, %s107, %s108
      %p112 = pneg %p106
      %p113 = scmp.eq.s32.totalorder %s31, 1
      %p114 = por %p112, %p113
      %p115 = scmp.ne.s32.totalorder %s107, %s110
      %p116 = scmp.eq.s32.totalorder %s31, 0
      %p117 = por %p115, %p116
      %p118 = scmp.ne.s32.totalorder %s107, %s110
      %p119 = scmp.eq.s32.totalorder %s36, 1
      %p120 = por %p118, %p119
      %p121 = scmp.ne.s32.totalorder %s110, %s111
      %p122 = scmp.eq.s32.totalorder %s36, 0
      %p123 = por %p121, %p122
      %p124 = scmp.ne.s32.totalorder %s110, %s111
      %p125 = scmp.eq.s32.totalorder %s37, 1
      %p126 = por %p124, %p125
      %p128 = scmp.ne.s32.totalorder %s111, %s127
      %p129 = scmp.eq.s32.totalorder %s37, 0
      %p130 = por %p128, %p129
      %s132 = sadd.s32 %s131, 1
      %p135 = scmp.eq.s32.totalorder %s31, 1
      %p136 = scmp.ne.s32.totalorder %s131, %s133
      %p137 = scmp.eq.s32.totalorder %s31, 0
      %p138 = por %p136, %p137
      %p139 = scmp.ne.s32.totalorder %s131, %s133
      %p140 = scmp.eq.s32.totalorder %s36, 1
      %p141 = por %p139, %p140
      %p142 = scmp.ne.s32.totalorder %s133, %s134
      %p143 = scmp.eq.s32.totalorder %s36, 0
      %p144 = por %p142, %p143
      %p145 = scmp.ne.s32.totalorder %s133, %s134
      %p146 = scmp.eq.s32.totalorder %s37, 1
      %p147 = por %p145, %p146
      %p149 = scmp.ne.s32.totalorder %s134, %s148
      %p150 = scmp.eq.s32.totalorder %s37, 0
      %p151 = por %p149, %p150
      %s153 = sadd.s32 %s152, 1
      %p156 = scmp.eq.s32.totalorder %s31, 1
      %p157 = scmp.ne.s32.totalorder %s152, %s154
      %p158 = scmp.eq.s32.totalorder %s31, 0
      %p159 = por %p157, %p158
      %p160 = scmp.ne.s32.totalorder %s152, %s154
      %p161 = scmp.eq.s32.totalorder %s36, 1
      %p162 = por %p160, %p161
      %p163 = scmp.ne.s32.totalorder %s154, %s155
      %p164 = scmp.eq.s32.totalorder %s36, 0
      %p165 = por %p163, %p164
      %p166 = scmp.ne.s32.totalorder %s154, %s155
      %p167 = scmp.eq.s32.totalorder %s37, 1
      %p168 = por %p166, %p167
      %p170 = scmp.ne.s32.totalorder %s155, %s169
      %p171 = scmp.eq.s32.totalorder %s37, 0
      %p172 = por %p170, %p171
      %s174 = sadd.s32 %s173, 1
      %p177 = scmp.eq.s32.totalorder %s31, 1
      %p178 = scmp.ne.s32.totalorder %s173, %s175
      %p179 = scmp.eq.s32.totalorder %s31, 0
      %p180 = por %p178, %p179
      %p181 = scmp.ne.s32.totalorder %s173, %s175
      %p182 = scmp.eq.s32.totalorder %s36, 1
      %p183 = por %p181, %p182
      %p184 = scmp.ne.s32.totalorder %s175, %s176
      %p185 = scmp.eq.s32.totalorder %s36, 0
      %p186 = por %p184, %p185
      %p187 = scmp.ne.s32.totalorder %s175, %s176
      %p188 = scmp.eq.s32.totalorder %s37, 1
      %p189 = por %p187, %p188
      %p191 = scmp.ne.s32.totalorder %s176, %s190
      %p192 = scmp.eq.s32.totalorder %s37, 0
      %p193 = por %p191, %p192
      %s195 = sadd.s32 %s194, 1
      %p198 = scmp.eq.s32.totalorder %s31, 1
      %p199 = scmp.ne.s32.totalorder %s194, %s196
      %p200 = scmp.eq.s32.totalorder %s31, 0
      %p201 = por %p199, %p200
      %p202 = scmp.ne.s32.totalorder %s194, %s196
      %p203 = scmp.eq.s32.totalorder %s36, 1
      %p204 = por %p202, %p203
      %p205 = scmp.ne.s32.totalorder %s196, %s197
      %p206 = scmp.eq.s32.totalorder %s36, 0
      %p207 = por %p205, %p206
      %p208 = scmp.ne.s32.totalorder %s196, %s197
      %p209 = scmp.eq.s32.totalorder %s37, 1
      %p210 = por %p208, %p209
      %p212 = scmp.ne.s32.totalorder %s197, %s211
      %p213 = scmp.eq.s32.totalorder %s37, 0
      %p214 = por %p212, %p213
      %s216 = sadd.s32 %s215, 1
      %p219 = scmp.eq.s32.totalorder %s31, 1
      %p220 = scmp.ne.s32.totalorder %s215, %s217
      %p221 = scmp.eq.s32.totalorder %s31, 0
      %p222 = por %p220, %p221
      %p223 = scmp.ne.s32.totalorder %s215, %s217
      %p224 = scmp.eq.s32.totalorder %s36, 1
      %p225 = por %p223, %p224
      %p226 = scmp.ne.s32.totalorder %s217, %s218
      %p227 = scmp.eq.s32.totalorder %s36, 0
      %p228 = por %p226, %p227
      %p229 = scmp.ne.s32.totalorder %s217, %s218
      %p230 = scmp.eq.s32.totalorder %s37, 1
      %p231 = por %p229, %p230
      %p233 = scmp.ne.s32.totalorder %s218, %s232
      %p234 = scmp.eq.s32.totalorder %s37, 0
      %p235 = por %p233, %p234
      %s237 = sadd.s32 %s236, 1
      %p240 = scmp.eq.s32.totalorder %s31, 1
      %p241 = scmp.ne.s32.totalorder %s236, %s238
      %p242 = scmp.eq.s32.totalorder %s31, 0
      %p243 = por %p241, %p242
      %p244 = scmp.ne.s32.totalorder %s236, %s238
      %p245 = scmp.eq.s32.totalorder %s36, 1
      %p246 = por %p244, %p245
      %p247 = scmp.ne.s32.totalorder %s238, %s239
      %p248 = scmp.eq.s32.totalorder %s36, 0
      %p249 = por %p247, %p248
      %p250 = scmp.ne.s32.totalorder %s238, %s239
      %p251 = scmp.eq.s32.totalorder %s37, 1
      %p252 = por %p250, %p251
      %p254 = scmp.ne.s32.totalorder %s239, %s253
      %p255 = scmp.eq.s32.totalorder %s37, 0
      %p256 = por %p254, %p255
      %s257 = ssub.s32 %s38, %s50
      %s258 = ssub.s32 %s39, %s46
      %s259 = sor.u32 %s257, %s258
      %p260 = scmp.eq.s32.totalorder %s259, 0
      %s262 = sadd.s32 %s261, 1
      %s263 = scalar_select %p260, %s261, %s262
      %p266 = pneg %p260
      %p267 = scmp.eq.s32.totalorder %s31, 1
      %p268 = por %p266, %p267
      %p269 = scmp.ne.s32.totalorder %s261, %s264
      %p270 = scmp.eq.s32.totalorder %s31, 0
      %p271 = por %p269, %p270
      %p272 = scmp.ne.s32.totalorder %s261, %s264
      %p273 = scmp.eq.s32.totalorder %s36, 1
      %p274 = por %p272, %p273
      %p275 = scmp.ne.s32.totalorder %s264, %s265
      %p276 = scmp.eq.s32.totalorder %s36, 0
      %p277 = por %p275, %p276
      %p278 = scmp.ne.s32.totalorder %s264, %s265
      %p279 = scmp.eq.s32.totalorder %s37, 1
      %p280 = por %p278, %p279
      %p282 = scmp.ne.s32.totalorder %s265, %s281
      %p283 = scmp.eq.s32.totalorder %s37, 0
      %p284 = por %p282, %p283
      %s285 = ssub.s32 %s38, %s50
      %s286 = ssub.s32 %s39, %s46
      %s287 = sor.u32 %s285, %s286
      %p288 = scmp.eq.s32.totalorder %s287, 0
      %s290 = sadd.s32 %s289, 1
      %s291 = scalar_select %p288, %s289, %s290
      %p294 = pneg %p288
      %p295 = scmp.eq.s32.totalorder %s31, 1
      %p296 = por %p294, %p295
      %p297 = scmp.ne.s32.totalorder %s289, %s292
      %p298 = scmp.eq.s32.totalorder %s31, 0
      %p299 = por %p297, %p298
      %p300 = scmp.ne.s32.totalorder %s289, %s292
      %p301 = scmp.eq.s32.totalorder %s36, 1
      %p302 = por %p300, %p301
      %p303 = scmp.ne.s32.totalorder %s292, %s293
      %p304 = scmp.eq.s32.totalorder %s36, 0
      %p305 = por %p303, %p304
      %p306 = scmp.ne.s32.totalorder %s292, %s293
      %p307 = scmp.eq.s32.totalorder %s37, 1
      %p308 = por %p306, %p307
      %p310 = scmp.ne.s32.totalorder %s293, %s309
      %p311 = scmp.eq.s32.totalorder %s37, 0
      %p312 = por %p310, %p311
      %s313 = ssub.s32 %s38, %s50
      %s314 = ssub.s32 %s39, %s46
      %s315 = sor.u32 %s313, %s314
      %p316 = scmp.eq.s32.totalorder %s315, 0
      %s318 = sadd.s32 %s317, 1
      %s319 = scalar_select %p316, %s317, %s318
      %p322 = pneg %p316
      %p323 = scmp.eq.s32.totalorder %s31, 1
      %p324 = por %p322, %p323
      %p325 = scmp.ne.s32.totalorder %s317, %s320
      %p326 = scmp.eq.s32.totalorder %s31, 0
      %p327 = por %p325, %p326
      %p328 = scmp.ne.s32.totalorder %s317, %s320
      %p329 = scmp.eq.s32.totalorder %s36, 1
      %p330 = por %p328, %p329
      %p331 = scmp.ne.s32.totalorder %s320, %s321
      %p332 = scmp.eq.s32.totalorder %s36, 0
      %p333 = por %p331, %p332
      %p334 = scmp.ne.s32.totalorder %s320, %s321
      %p335 = scmp.eq.s32.totalorder %s37, 1
      %p336 = por %p334, %p335
      %p338 = scmp.ne.s32.totalorder %s321, %s337
      %p339 = scmp.eq.s32.totalorder %s37, 0
      %p340 = por %p338, %p339
      %p341 = scmp.le.s32.totalorder 1, %s31
      %p342 = scmp.lt.s32.totalorder %s31, 3
      %p343 = pnand %p341, %p342
      %p344 = pneg %p343
      // Predicated region
      $region9: #{tpu_custom_call.1} parent=5 // pred_check
        _
      $region10: #{tpu_custom_call.1} parent=5 // pred_check_branch
        %346 = sbr.rel (%p343) target = $region12
      $region11: #{tpu_custom_call.1} parent=5 // pred_region
        %s347 = ssub.s32 %s31, 1
        // Predicated region
        $region13: #{tpu_custom_call.1} parent=11 // pred_check
          %p348 = pneg %p144
        $region14: #{tpu_custom_call.1} parent=11 // pred_check_branch
          %350 = sbr.rel (%p348) target = $region16
        $region15: #{tpu_custom_call.1} parent=11 // pred_region
          %352 = vsyncadd [#allocation9], 0
          %s353 = sshll.u32 %s3, 4
          %s354 = int_to_ptr.hbm [resolvable:$true] %s353
          %s355 = sshll.u32 [#allocation8], 4
          %s356 = int_to_ptr.vmem [resolvable:$true] %s355
          %361 = dma.hbm_to_vmem [thread:$0]  %s354, 3072, %s356, [#allocation9], 192, 192, 12
        $region16: #{tpu_custom_call.1} parent=11 // pred_fallthru
          _
        // Predicated region
        $region17: #{tpu_custom_call.1} parent=11 // pred_check
          %p362 = pneg %p165
        $region18: #{tpu_custom_call.1} parent=11 // pred_check_branch
          %364 = sbr.rel (%p362) target = $region20
        $region19: #{tpu_custom_call.1} parent=11 // pred_region
          _
        $region20: #{tpu_custom_call.1} parent=11 // pred_fallthru
          _
        // Predicated region
        $region21: #{tpu_custom_call.1} parent=11 // pred_check
          %p365 = pneg %p186
        $region22: #{tpu_custom_call.1} parent=11 // pred_check_branch
          %367 = sbr.rel (%p365) target = $region24
        $region23: #{tpu_custom_call.1} parent=11 // pred_region
          _
        $region24: #{tpu_custom_call.1} parent=11 // pred_fallthru
          _
        // Predicated region
        $region25: #{tpu_custom_call.1} parent=11 // pred_check
          %p368 = pneg %p207
        $region26: #{tpu_custom_call.1} parent=11 // pred_check_branch
          %370 = sbr.rel (%p368) target = $region28
        $region27: #{tpu_custom_call.1} parent=11 // pred_region
          _
        $region28: #{tpu_custom_call.1} parent=11 // pred_fallthru
          _
        // Predicated region
        $region29: #{tpu_custom_call.1} parent=11 // pred_check
          %p371 = pneg %p228
        $region30: #{tpu_custom_call.1} parent=11 // pred_check_branch
          %373 = sbr.rel (%p371) target = $region32
        $region31: #{tpu_custom_call.1} parent=11 // pred_region
          _
        $region32: #{tpu_custom_call.1} parent=11 // pred_fallthru
          _
        // Predicated region
        $region33: #{tpu_custom_call.1} parent=11 // pred_check
          %p374 = pneg %p249
        $region34: #{tpu_custom_call.1} parent=11 // pred_check_branch
          %376 = sbr.rel (%p374) target = $region36
        $region35: #{tpu_custom_call.1} parent=11 // pred_region
          _
        $region36: #{tpu_custom_call.1} parent=11 // pred_fallthru
          _
      $region12: #{tpu_custom_call.1} parent=5 // pred_fallthru
        _
      %p377 = scmp.lt.s32.totalorder %s31, 2
      // Predicated region
      $region37: #{tpu_custom_call.1} parent=5 // pred_check
        %p378 = pneg %p377
      $region38: #{tpu_custom_call.1} parent=5 // pred_check_branch
        %380 = sbr.rel (%p378) target = $region40
      $region39: #{tpu_custom_call.1} parent=5 // pred_region
        // Predicated region
        $region41: #{tpu_custom_call.1} parent=39 // pred_check
          %p381 = pneg %p63
        $region42: #{tpu_custom_call.1} parent=39 // pred_check_branch
          %383 = sbr.rel (%p381) target = $region44
        $region43: #{tpu_custom_call.1} parent=39 // pred_region
          %s384 = sand.u32 %s53, 1
          %s385 = scalar_lea.sflag [#allocation3], %s384
          %s386 = sand.u32 %s53, 1
          %s387 = scalar_lea.vmem [#allocation2], %s386
          %389 = vsyncadd %s385, 0
          %s390 = scalar_lea.hbm %s0, %s38
          %s392 = sshll.u32 %s390, 4
          %s393 = int_to_ptr.hbm [resolvable:$true] %s392
          %s394 = sshll.u32 %s387, 4
          %s395 = int_to_ptr.vmem [resolvable:$true] %s394
          %397 = dma.hbm_to_vmem [thread:$0]  %s393, 16, %s395, %s385
        $region44: #{tpu_custom_call.1} parent=39 // pred_fallthru
          _
        // Predicated region
        $region45: #{tpu_custom_call.1} parent=39 // pred_check
          %p398 = pneg %p89
        $region46: #{tpu_custom_call.1} parent=39 // pred_check_branch
          %400 = sbr.rel (%p398) target = $region48
        $region47: #{tpu_custom_call.1} parent=39 // pred_region
          %s401 = sand.u32 %s31, 1
          %s402 = scalar_lea.sflag [#allocation6], %s401
          %s403 = sand.u32 %s79, 1
          %s404 = scalar_lea.vmem [#allocation5], %s403
          %406 = vsyncadd %s402, 0
          %s407 = scalar_lea.hbm %s1, %s38
          %s409 = sshll.u32 %s407, 4
          %s410 = int_to_ptr.hbm [resolvable:$true] %s409
          %s411 = sshll.u32 %s404, 4
          %s412 = int_to_ptr.vmem [resolvable:$true] %s411
          %414 = dma.hbm_to_vmem [thread:$0]  %s410, 16, %s412, %s402
        $region48: #{tpu_custom_call.1} parent=39 // pred_fallthru
          _
        // Predicated region
        $region49: #{tpu_custom_call.1} parent=39 // pred_check
          %p415 = pneg %p117
        $region50: #{tpu_custom_call.1} parent=39 // pred_check_branch
          %417 = sbr.rel (%p415) target = $region52
        $region51: #{tpu_custom_call.1} parent=39 // pred_region
          %s418 = sand.u32 %s31, 1
          %s419 = scalar_lea.sflag [#allocation6], %s418
          %s420 = sand.u32 %s107, 1
          %s421 = smul.addr %s420, 16
          %s422 = scalar_lea.vmem [#allocation7], %s421
          %s423 = smul.u32 2, %s39
          %425 = vsyncadd %s419, 0
          %s426 = smul.addr %s38, 2
          %s427 = sadd.s32 %s423, %s426
          %s428 = smul.addr %s427, 8
          %s429 = scalar_lea.hbm %s2, %s428
          %s430 = sshll.u32 %s429, 4
          %s431 = int_to_ptr.hbm [resolvable:$true] %s430
          %s432 = sshll.u32 %s422, 4
          %s433 = int_to_ptr.vmem [resolvable:$true] %s432
          %438 = dma.hbm_to_vmem [thread:$0]  %s431, 256, %s433, %s419, 128, 128, 8
        $region52: #{tpu_custom_call.1} parent=39 // pred_fallthru
          _
      $region40: #{tpu_custom_call.1} parent=5 // pred_fallthru
        _
      %p439 = scmp.le.s32.totalorder 1, %s31
      %p440 = scmp.lt.s32.totalorder %s31, 3
      %p441 = pnand %p439, %p440
      %p442 = pneg %p441
      // Predicated region
      $region53: #{tpu_custom_call.1} parent=5 // pred_check
        _
      $region54: #{tpu_custom_call.1} parent=5 // pred_check_branch
        %444 = sbr.rel (%p441) target = $region56
      $region55: #{tpu_custom_call.1} parent=5 // pred_region
        %s445 = ssub.s32 %s31, 1
        %s446 = sand.u32 %s56, 1
        %s447 = scalar_lea.sflag [#allocation3], %s446
        %s448 = sand.u32 %s56, 1
        %s449 = scalar_lea.vmem [#allocation2], %s448
        // Predicated region
        $region57: #{tpu_custom_call.1} parent=55 // pred_check
          %p450 = pneg %p69
        $region58: #{tpu_custom_call.1} parent=55 // pred_check_branch
          %452 = sbr.rel (%p450) target = $region60
        $region59: #{tpu_custom_call.1} parent=55 // pred_region
          %454 = dma.done %s447, 16
        $region60: #{tpu_custom_call.1} parent=55 // pred_fallthru
          _
        %s455 = sand.u32 %s36, 1
        %s456 = scalar_lea.sflag [#allocation6], %s455
        %s457 = sand.u32 %s82, 1
        %s458 = scalar_lea.vmem [#allocation5], %s457
        // Predicated region
        $region61: #{tpu_custom_call.1} parent=55 // pred_check
          %p459 = pneg %p95
        $region62: #{tpu_custom_call.1} parent=55 // pred_check_branch
          %461 = sbr.rel (%p459) target = $region64
        $region63: #{tpu_custom_call.1} parent=55 // pred_region
          %463 = dma.done %s456, 16
        $region64: #{tpu_custom_call.1} parent=55 // pred_fallthru
          _
        %s464 = sand.u32 %s36, 1
        %s465 = scalar_lea.sflag [#allocation6], %s464
        %s466 = sand.u32 %s110, 1
        %s467 = smul.addr %s466, 16
        %s468 = scalar_lea.vmem [#allocation7], %s467
        // Predicated region
        $region65: #{tpu_custom_call.1} parent=55 // pred_check
          %p469 = pneg %p123
        $region66: #{tpu_custom_call.1} parent=55 // pred_check_branch
          %471 = sbr.rel (%p469) target = $region68
        $region67: #{tpu_custom_call.1} parent=55 // pred_region
          %473 = dma.done %s465, 256
        $region68: #{tpu_custom_call.1} parent=55 // pred_fallthru
          _
        // Predicated region
        $region69: #{tpu_custom_call.1} parent=55 // pred_check
          %p474 = pneg %p144
        $region70: #{tpu_custom_call.1} parent=55 // pred_check_branch
          %476 = sbr.rel (%p474) target = $region72
        $region71: #{tpu_custom_call.1} parent=55 // pred_region
          %478 = dma.done [#allocation9], 3072
        $region72: #{tpu_custom_call.1} parent=55 // pred_fallthru
          _
        %s479 = sand.u32 %s56, 1
        %s480 = scalar_lea.sflag [#allocation3], %s479
        %s481 = sand.u32 %s56, 1
        %s482 = scalar_lea.vmem [#allocation2], %s481
        %p483 = pneg %p69
        %p484 = pneg %p66
        %s485 = sand.u32 %s36, 1
        %s486 = scalar_lea.sflag [#allocation6], %s485
        %s487 = sand.u32 %s82, 1
        %s488 = scalar_lea.vmem [#allocation5], %s487
        %p489 = pneg %p95
        %p490 = pneg %p92
        %s491 = sand.u32 %s36, 1
        %s492 = scalar_lea.sflag [#allocation6], %s491
        %s493 = sand.u32 %s110, 1
        %s494 = smul.addr %s493, 16
        %s495 = scalar_lea.vmem [#allocation7], %s494
        %p496 = pneg %p123
        %p497 = pneg %p120
        %p498 = pneg %p144
        %p499 = pneg %p141
        %p500 = pneg %p165
        %p501 = pneg %p162
        %p502 = pneg %p186
        %p503 = pneg %p183
        %p504 = pneg %p207
        %p505 = pneg %p204
        %p506 = pneg %p228
        %p507 = pneg %p225
        %p508 = pneg %p249
        %p509 = pneg %p246
        %p510 = pneg %p277
        %p511 = pneg %p274
        %s512 = sand.u32 %s264, 1
        %s513 = scalar_lea.sflag [#allocation4], %s512
        %s514 = sand.u32 %s264, 1
        %s515 = smul.addr %s514, 16
        %s516 = scalar_lea.vmem [#allocation10], %s515
        %p517 = pneg %p305
        %p518 = pneg %p302
        %s519 = sand.u32 %s36, 1
        %s520 = scalar_lea.sflag [#allocation12], %s519
        %s521 = sand.u32 %s292, 1
        %s522 = smul.addr %s521, 16
        %s523 = scalar_lea.vmem [#allocation11], %s522
        %p524 = pneg %p333
        %p525 = pneg %p330
        %s526 = sand.u32 %s36, 1
        %s527 = scalar_lea.sflag [#allocation12], %s526
        %s528 = sand.u32 %s320, 1
        %s529 = smul.addr %s528, 16
        %s530 = scalar_lea.vmem [#allocation13], %s529
        %s531 = smul.u32 2, %s41
        %s532 = smul.u32 2, %s41
        %s533 = smul.u32 2, %s41
        %s534 = smul.u32 2, %s41
        %v535 = vld [vmem:[%s468] sm:$0xff]
        %v536 = vld [vmem:[%s468 + $0x8] sm:$0xff]
        %537 = vadd.xlane.f32.xlu0 %v535
        %v538 = vpop.xlane.xlu0 %537
        %539 = vadd.xlane.f32.xlu0 %v536
        %v540 = vpop.xlane.xlu0 %539
        %v541 = vrcp.pop 128.0
        %v542 = vmul.f32 128.0, %v541
        %v543 = vsub.f32 1.0, %v542
        %v544 = vmul.f32 %v541, %v543
        %v545 = vadd.f32 %v541, %v544
        %vm546 = vweird.f32 %v541
        %v547 = vsel %vm546, %v541, %v545
        %v548 = vmul.f32 %v538, %v547
        %v549 = vmul.f32 %v540, %v547
        %v550 = vmul.f32 %v535, %v535
        %v551 = vmul.f32 %v536, %v536
        %552 = vadd.xlane.f32.xlu0 %v550
        %v553 = vpop.xlane.xlu0 %552
        %554 = vadd.xlane.f32.xlu0 %v551
        %v555 = vpop.xlane.xlu0 %554
        %v556 = vmul.f32 %v553, %v547
        %v557 = vmul.f32 %v555, %v547
        %v558 = vmul.f32 %v548, %v548
        %v559 = vmul.f32 %v549, %v549
        %v560 = vsub.f32 %v556, %v558
        %v561 = vsub.f32 %v557, %v559
        %v562 = vadd.f32 %v560, 1e-06
        %v563 = vadd.f32 %v561, 1e-06
        %v564 = vrsqrt.pop %v562
        %v565 = vmul.f32 %v564, %v562
        %v566 = vmul.f32 %v565, %v564
        %v567 = vmul.f32 0.5, %v566
        %v568 = vsub.f32 1.5, %v567
        %v569 = vmul.f32 %v564, %v568
        %vm570 = vweird.f32 %v562
        %vm571 = vweird.f32 %v564
        %vm572 = vmor %vm570, %vm571
        %v573 = vsel %vm572, %v564, %v569
        %v574 = vrsqrt.pop %v563
        %v575 = vmul.f32 %v574, %v563
        %v576 = vmul.f32 %v575, %v574
        %v577 = vmul.f32 0.5, %v576
        %v578 = vsub.f32 1.5, %v577
        %v579 = vmul.f32 %v574, %v578
        %vm580 = vweird.f32 %v563
        %vm581 = vweird.f32 %v574
        %vm582 = vmor %vm580, %vm581
        %v583 = vsel %vm582, %v574, %v579
        %v584 = vsub.f32 %v535, %v548
        %v585 = vsub.f32 %v536, %v549
        %v586 = vld [vmem:[%s458] sm:$0x1]
        %v588 = vperm.slane %v586, 0
        %v590 = vmul.f32 %v573, %v588
        %v591 = vmul.f32 %v583, %v588
        %v592 = vmul.f32 %v584, %v590
        %v593 = vmul.f32 %v585, %v591
        %v594 = vld [vmem:[%s449] sm:$0x1]
        %v596 = vperm.slane %v594, 0
        %v598 = vadd.f32 %v592, %v596
        %v599 = vadd.f32 %v593, %v596
        %v600 = vld [vmem:[#allocation8] sm:$0xff]
        %v601 = vld [vmem:[#allocation8 + $0x8] sm:$0xf]
        %v602 = vld [vmem:[#allocation8 + $0xc] sm:$0xff]
        %v603 = vld [vmem:[#allocation8 + $0x14] sm:$0xf]
        %v604 = vld [vmem:[#allocation8 + $0x18] sm:$0xff]
        %v605 = vld [vmem:[#allocation8 + $0x20] sm:$0xf]
        %v606 = vld [vmem:[#allocation8 + $0x24] sm:$0xff]
        %v607 = vld [vmem:[#allocation8 + $0x2c] sm:$0xf]
        %v608 = vld [vmem:[#allocation8 + $0x30] sm:$0xff]
        %v609 = vld [vmem:[#allocation8 + $0x38] sm:$0xf]
        %v610 = vld [vmem:[#allocation8 + $0x3c] sm:$0xff]
        %v611 = vld [vmem:[#allocation8 + $0x44] sm:$0xf]
        %v612 = vld [vmem:[#allocation8 + $0x48] sm:$0xff]
        %v613 = vld [vmem:[#allocation8 + $0x50] sm:$0xf]
        %v614 = vld [vmem:[#allocation8 + $0x54] sm:$0xff]
        %v615 = vld [vmem:[#allocation8 + $0x5c] sm:$0xf]
        %v616 = vld [vmem:[#allocation8 + $0x60] sm:$0xff]
        %v617 = vld [vmem:[#allocation8 + $0x68] sm:$0xf]
        %v618 = vld [vmem:[#allocation8 + $0x6c] sm:$0xff]
        %v619 = vld [vmem:[#allocation8 + $0x74] sm:$0xf]
        %v620 = vld [vmem:[#allocation8 + $0x78] sm:$0xff]
        %v621 = vld [vmem:[#allocation8 + $0x80] sm:$0xf]
        %v622 = vld [vmem:[#allocation8 + $0x84] sm:$0xff]
        %v623 = vld [vmem:[#allocation8 + $0x8c] sm:$0xf]
        %v624 = vld [vmem:[#allocation8 + $0x90] sm:$0xff]
        %v625 = vld [vmem:[#allocation8 + $0x98] sm:$0xf]
        %v626 = vld [vmem:[#allocation8 + $0x9c] sm:$0xff]
        %v627 = vld [vmem:[#allocation8 + $0xa4] sm:$0xf]
        %v628 = vld [vmem:[#allocation8 + $0xa8] sm:$0xff]
        %v629 = vld [vmem:[#allocation8 + $0xb0] sm:$0xf]
        %v630 = vld [vmem:[#allocation8 + $0xb4] sm:$0xff]
        %v631 = vld [vmem:[#allocation8 + $0xbc] sm:$0xf]
        %v632 = vpack.c.bf16 %v599, %v598
        %v633 = vld [vmem:[%s4] sm:$0x7]
        %v635 = vperm.slane %v633, 0
        %v636 = vperm.slane %v633, 1
        %v637 = vperm.slane %v633, 2
        %v673 = vunpack.c.l.b16 %v600
        %v674 = vunpack.c.h.b16 %v600
        %v675 = vunpack.c.l.b16 %v601
        %v676 = vunpack.c.l.b16 %v602
        %v677 = vunpack.c.h.b16 %v602
        %v678 = vunpack.c.l.b16 %v603
        %v679 = vunpack.c.l.b16 %v604
        %v680 = vunpack.c.h.b16 %v604
        %v681 = vunpack.c.l.b16 %v605
        %v682 = vunpack.c.l.b16 %v606
        %v683 = vunpack.c.h.b16 %v606
        %v684 = vunpack.c.l.b16 %v607
        %v685 = vunpack.c.l.b16 %v608
        %v686 = vunpack.c.h.b16 %v608
        %v687 = vunpack.c.l.b16 %v609
        %v688 = vunpack.c.l.b16 %v610
        %v689 = vunpack.c.h.b16 %v610
        %v690 = vunpack.c.l.b16 %v611
        %v691 = vunpack.c.l.b16 %v612
        %v692 = vunpack.c.h.b16 %v612
        %v693 = vunpack.c.l.b16 %v613
        %v694 = vunpack.c.l.b16 %v614
        %v695 = vunpack.c.h.b16 %v614
        %v696 = vunpack.c.l.b16 %v615
        %v697 = vunpack.c.l.b16 %v616
        %v698 = vunpack.c.h.b16 %v616
        %v699 = vunpack.c.l.b16 %v617
        %v700 = vunpack.c.l.b16 %v618
        %v701 = vunpack.c.h.b16 %v618
        %v702 = vunpack.c.l.b16 %v619
        %v703 = vunpack.c.l.b16 %v620
        %v704 = vunpack.c.h.b16 %v620
        %v705 = vunpack.c.l.b16 %v621
        %v706 = vunpack.c.l.b16 %v622
        %v707 = vunpack.c.h.b16 %v622
        %v708 = vunpack.c.l.b16 %v623
        %v709 = vunpack.c.l.b16 %v624
        %v710 = vunpack.c.h.b16 %v624
        %v711 = vunpack.c.l.b16 %v625
        %v712 = vunpack.c.l.b16 %v626
        %v713 = vunpack.c.h.b16 %v626
        %v714 = vunpack.c.l.b16 %v627
        %v715 = vunpack.c.l.b16 %v628
        %v716 = vunpack.c.h.b16 %v628
        %v717 = vunpack.c.l.b16 %v629
        %v718 = vunpack.c.l.b16 %v630
        %v719 = vunpack.c.h.b16 %v630
        %v720 = vunpack.c.l.b16 %v631
        %v721 = vpack.c.b16 %v676, %v673
        %v722 = vpack.c.b16 %v677, %v674
        %v723 = vpack.c.b16 %v678, %v675
        %v724 = vpack.c.b16 %v682, %v679
        %v725 = vpack.c.b16 %v683, %v680
        %v726 = vpack.c.b16 %v684, %v681
        %v727 = vpack.c.b16 %v688, %v685
        %v728 = vpack.c.b16 %v689, %v686
        %v729 = vpack.c.b16 %v690, %v687
        %v730 = vpack.c.b16 %v694, %v691
        %v731 = vpack.c.b16 %v695, %v692
        %v732 = vpack.c.b16 %v696, %v693
        %v733 = vpack.c.b16 %v700, %v697
        %v734 = vpack.c.b16 %v701, %v698
        %v735 = vpack.c.b16 %v702, %v699
        %v736 = vpack.c.b16 %v706, %v703
        %v737 = vpack.c.b16 %v707, %v704
        %v738 = vpack.c.b16 %v708, %v705
        %v739 = vpack.c.b16 %v712, %v709
        %v740 = vpack.c.b16 %v713, %v710
        %v741 = vpack.c.b16 %v714, %v711
        %v742 = vpack.c.b16 %v718, %v715
        %v743 = vpack.c.b16 %v719, %v716
        %v744 = vpack.c.b16 %v720, %v717
        %769 = vmatpush.bf16.msra.mxu0 %v742
        %770 = vmatpush.bf16.msra.mxu0 %v739
        %771 = vmatpush.bf16.msra.mxu0 %v736
        %772 = vmatpush.bf16.msra.mxu0 %v733
        %773 = vmatpush.bf16.msra.mxu0 %v730
        %774 = vmatpush.bf16.msra.mxu0 %v727
        %775 = vmatpush.bf16.msra.mxu0 %v724
        %776 = vmatpush.bf16.msra.mxu0 %v721
        %777 = vmatmul.bf16.gmra.mxu0 %v632
        %v778 = vpop.f32.mrf.mxu0
        %v779 = vadd.f32 %v635, %v778
        %v780 = vpop.f32.mrf.mxu0
        %v781 = vadd.f32 %v635, %v780
        %782 = vdwg.mxu0
        %783 = vmatpush.bf16.msra.mxu0 %v743
        %784 = vmatpush.bf16.msra.mxu0 %v740
        %785 = vmatpush.bf16.msra.mxu0 %v737
        %786 = vmatpush.bf16.msra.mxu0 %v734
        %787 = vmatpush.bf16.msra.mxu0 %v731
        %788 = vmatpush.bf16.msra.mxu0 %v728
        %789 = vmatpush.bf16.msra.mxu0 %v725
        %790 = vmatpush.bf16.msra.mxu0 %v722
        %791 = vmatmul.bf16.gmra.mxu0 %v632
        %v792 = vpop.f32.mrf.mxu0
        %v793 = vadd.f32 %v636, %v792
        %v794 = vpop.f32.mrf.mxu0
        %v795 = vadd.f32 %v636, %v794
        %796 = vdwg.mxu0
        %797 = vmatpush.bf16.msra.mxu0 %v744
        %798 = vmatpush.bf16.msra.mxu0 %v741
        %799 = vmatpush.bf16.msra.mxu0 %v738
        %800 = vmatpush.bf16.msra.mxu0 %v735
        %801 = vmatpush.bf16.msra.mxu0 %v732
        %802 = vmatpush.bf16.msra.mxu0 %v729
        %803 = vmatpush.bf16.msra.mxu0 %v726
        %804 = vmatpush.bf16.msra.mxu0 %v723
        %805 = vmatmul.bf16.gmra.mxu0 %v632
        %v806 = vpop.f32.mrf.mxu0
        %v807 = vadd.f32 %v637, %v806
        %v808 = vpop.f32.mrf.mxu0
        %v809 = vadd.f32 %v637, %v808
        %810 = vdwg.mxu0
        %v811 = vld [vmem:[%s5] sm:$0x1]
        %v812 = vld [vmem:[%s6] sm:$0x1]
        %813 = vadd.xlane.f32.xlu0 %v779
        %v814 = vpop.xlane.xlu0 %813
        %815 = vadd.xlane.f32.xlu0 %v781
        %v816 = vpop.xlane.xlu0 %815
        %v817 = vmul.f32 %v814, %v547
        %v818 = vmul.f32 %v816, %v547
        %v819 = vmul.f32 %v779, %v779
        %v820 = vmul.f32 %v781, %v781
        %821 = vadd.xlane.f32.xlu0 %v819
        %v822 = vpop.xlane.xlu0 %821
        %823 = vadd.xlane.f32.xlu0 %v820
        %v824 = vpop.xlane.xlu0 %823
        %v825 = vmul.f32 %v822, %v547
        %v826 = vmul.f32 %v824, %v547
        %v827 = vmul.f32 %v817, %v817
        %v828 = vmul.f32 %v818, %v818
        %v829 = vsub.f32 %v825, %v827
        %v830 = vsub.f32 %v826, %v828
        %v831 = vadd.f32 %v829, 1e-06
        %v832 = vadd.f32 %v830, 1e-06
        %v833 = vrsqrt.pop %v831
        %v834 = vmul.f32 %v833, %v831
        %v835 = vmul.f32 %v834, %v833
        %v836 = vmul.f32 0.5, %v835
        %v837 = vsub.f32 1.5, %v836
        %v838 = vmul.f32 %v833, %v837
        %vm839 = vweird.f32 %v831
        %vm840 = vweird.f32 %v833
        %vm841 = vmor %vm839, %vm840
        %v842 = vsel %vm841, %v833, %v838
        %v843 = vrsqrt.pop %v832
        %v844 = vmul.f32 %v843, %v832
        %v845 = vmul.f32 %v844, %v843
        %v846 = vmul.f32 0.5, %v845
        %v847 = vsub.f32 1.5, %v846
        %v848 = vmul.f32 %v843, %v847
        %vm849 = vweird.f32 %v832
        %vm850 = vweird.f32 %v843
        %vm851 = vmor %vm849, %vm850
        %v852 = vsel %vm851, %v843, %v848
        %v853 = vsub.f32 %v779, %v817
        %v854 = vsub.f32 %v781, %v818
        %v856 = vperm.slane %v811, 0
        %v858 = vmul.f32 %v842, %v856
        %v859 = vmul.f32 %v852, %v856
        %v860 = vmul.f32 %v853, %v858
        %v861 = vmul.f32 %v854, %v859
        %v863 = vperm.slane %v812, 0
        %v865 = vadd.f32 %v860, %v863
        %v866 = vadd.f32 %v861, %v863
        %867 = vst [vmem:[%s516] sm:$0xff] %v865
        %868 = vst [vmem:[%s516 + $0x8] sm:$0xff] %v866
        %v869 = vld [vmem:[%s7] sm:$0x1]
        %v870 = vld [vmem:[%s8] sm:$0x1]
        %871 = vadd.xlane.f32.xlu0 %v793
        %v872 = vpop.xlane.xlu0 %871
        %873 = vadd.xlane.f32.xlu0 %v795
        %v874 = vpop.xlane.xlu0 %873
        %v875 = vmul.f32 %v872, %v547
        %v876 = vmul.f32 %v874, %v547
        %v877 = vmul.f32 %v793, %v793
        %v878 = vmul.f32 %v795, %v795
        %879 = vadd.xlane.f32.xlu0 %v877
        %v880 = vpop.xlane.xlu0 %879
        %881 = vadd.xlane.f32.xlu0 %v878
        %v882 = vpop.xlane.xlu0 %881
        %v883 = vmul.f32 %v880, %v547
        %v884 = vmul.f32 %v882, %v547
        %v885 = vmul.f32 %v875, %v875
        %v886 = vmul.f32 %v876, %v876
        %v887 = vsub.f32 %v883, %v885
        %v888 = vsub.f32 %v884, %v886
        %v889 = vadd.f32 %v887, 1e-06
        %v890 = vadd.f32 %v888, 1e-06
        %v891 = vrsqrt.pop %v889
        %v892 = vmul.f32 %v891, %v889
        %v893 = vmul.f32 %v892, %v891
        %v894 = vmul.f32 0.5, %v893
        %v895 = vsub.f32 1.5, %v894
        %v896 = vmul.f32 %v891, %v895
        %vm897 = vweird.f32 %v889
        %vm898 = vweird.f32 %v891
        %vm899 = vmor %vm897, %vm898
        %v900 = vsel %vm899, %v891, %v896
        %v901 = vrsqrt.pop %v890
        %v902 = vmul.f32 %v901, %v890
        %v903 = vmul.f32 %v902, %v901
        %v904 = vmul.f32 0.5, %v903
        %v905 = vsub.f32 1.5, %v904
        %v906 = vmul.f32 %v901, %v905
        %vm907 = vweird.f32 %v890
        %vm908 = vweird.f32 %v901
        %vm909 = vmor %vm907, %vm908
        %v910 = vsel %vm909, %v901, %v906
        %v911 = vsub.f32 %v793, %v875
        %v912 = vsub.f32 %v795, %v876
        %v914 = vperm.slane %v869, 0
        %v916 = vmul.f32 %v900, %v914
        %v917 = vmul.f32 %v910, %v914
        %v918 = vmul.f32 %v911, %v916
        %v919 = vmul.f32 %v912, %v917
        %v921 = vperm.slane %v870, 0
        %v923 = vadd.f32 %v918, %v921
        %v924 = vadd.f32 %v919, %v921
        %925 = vst [vmem:[%s523] sm:$0xff] %v923
        %926 = vst [vmem:[%s523 + $0x8] sm:$0xff] %v924
        %927 = vst [vmem:[%s530] sm:$0xff] %v807
        %928 = vst [vmem:[%s530 + $0x8] sm:$0xff] %v809
        %s929 = sand.u32 %s264, 1
        %s930 = scalar_lea.sflag [#allocation4], %s929
        %s931 = sand.u32 %s264, 1
        %s932 = smul.addr %s931, 16
        %s933 = scalar_lea.vmem [#allocation10], %s932
        %s934 = sand.u32 %s36, 1
        %s935 = scalar_lea.sflag [#allocation12], %s934
        %s936 = sand.u32 %s292, 1
        %s937 = smul.addr %s936, 16
        %s938 = scalar_lea.vmem [#allocation11], %s937
        %s939 = sand.u32 %s36, 1
        %s940 = scalar_lea.sflag [#allocation12], %s939
        %s941 = sand.u32 %s320, 1
        %s942 = smul.addr %s941, 16
        %s943 = scalar_lea.vmem [#allocation13], %s942
        // Predicated region
        $region73: #{tpu_custom_call.1} parent=55 // pred_check
          %p944 = pneg %p274
        $region74: #{tpu_custom_call.1} parent=55 // pred_check_branch
          %946 = sbr.rel (%p944) target = $region76
        $region75: #{tpu_custom_call.1} parent=55 // pred_region
          %s947 = smul.u32 2, %s41
          %949 = vsyncadd %s930, 0
          %s950 = smul.addr %s40, 2
          %s951 = sadd.s32 %s947, %s950
          %s952 = smul.addr %s951, 8
          %s953 = scalar_lea.hbm %s9, %s952
          %s954 = sshll.u32 %s933, 4
          %s955 = int_to_ptr.vmem [resolvable:$true] %s954
          %s956 = sshll.u32 %s953, 4
          %s957 = int_to_ptr.hbm [resolvable:$true] %s956
          %962 = dma.vmem_to_hbm [thread:$0]  %s955, 256, %s957, %s930, 128, 128, 8
        $region76: #{tpu_custom_call.1} parent=55 // pred_fallthru
          _
        // Predicated region
        $region77: #{tpu_custom_call.1} parent=55 // pred_check
          %p963 = pneg %p302
        $region78: #{tpu_custom_call.1} parent=55 // pred_check_branch
          %965 = sbr.rel (%p963) target = $region80
        $region79: #{tpu_custom_call.1} parent=55 // pred_region
          %s966 = smul.u32 2, %s41
          %968 = vsyncadd %s935, 0
          %s969 = smul.addr %s40, 2
          %s970 = sadd.s32 %s966, %s969
          %s971 = smul.addr %s970, 8
          %s972 = scalar_lea.hbm %s10, %s971
          %s973 = sshll.u32 %s938, 4
          %s974 = int_to_ptr.vmem [resolvable:$true] %s973
          %s975 = sshll.u32 %s972, 4
          %s976 = int_to_ptr.hbm [resolvable:$true] %s975
          %981 = dma.vmem_to_hbm [thread:$0]  %s974, 256, %s976, %s935, 128, 128, 8
        $region80: #{tpu_custom_call.1} parent=55 // pred_fallthru
          _
        // Predicated region
        $region81: #{tpu_custom_call.1} parent=55 // pred_check
          %p982 = pneg %p330
        $region82: #{tpu_custom_call.1} parent=55 // pred_check_branch
          %984 = sbr.rel (%p982) target = $region84
        $region83: #{tpu_custom_call.1} parent=55 // pred_region
          %s985 = smul.u32 2, %s41
          %987 = vsyncadd %s940, 0
          %s988 = smul.addr %s40, 2
          %s989 = sadd.s32 %s985, %s988
          %s990 = smul.addr %s989, 8
          %s991 = scalar_lea.hbm %s11, %s990
          %s992 = sshll.u32 %s943, 4
          %s993 = int_to_ptr.vmem [resolvable:$true] %s992
          %s994 = sshll.u32 %s991, 4
          %s995 = int_to_ptr.hbm [resolvable:$true] %s994
          %1000 = dma.vmem_to_hbm [thread:$0]  %s993, 256, %s995, %s940, 128, 128, 8
        $region84: #{tpu_custom_call.1} parent=55 // pred_fallthru
          _
      $region56: #{tpu_custom_call.1} parent=5 // pred_fallthru
        _
      %p1001 = scmp.le.s32.totalorder 2, %s31
      // Predicated region
      $region85: #{tpu_custom_call.1} parent=5 // pred_check
        %p1002 = pneg %p1001
      $region86: #{tpu_custom_call.1} parent=5 // pred_check_branch
        %1004 = sbr.rel (%p1002) target = $region88
      $region87: #{tpu_custom_call.1} parent=5 // pred_region
        %s1005 = ssub.s32 %s31, 2
        // Predicated region
        $region89: #{tpu_custom_call.1} parent=87 // pred_check
          %p1006 = pneg %p280
        $region90: #{tpu_custom_call.1} parent=87 // pred_check_branch
          %1008 = sbr.rel (%p1006) target = $region92
        $region91: #{tpu_custom_call.1} parent=87 // pred_region
          %s1009 = sand.u32 %s265, 1
          %s1010 = scalar_lea.sflag [#allocation4], %s1009
          %s1011 = sand.u32 %s265, 1
          %s1012 = smul.addr %s1011, 16
          %s1013 = scalar_lea.vmem [#allocation10], %s1012
          %1015 = dma.done %s1010, 256
        $region92: #{tpu_custom_call.1} parent=87 // pred_fallthru
          _
        // Predicated region
        $region93: #{tpu_custom_call.1} parent=87 // pred_check
          %p1016 = pneg %p308
        $region94: #{tpu_custom_call.1} parent=87 // pred_check_branch
          %1018 = sbr.rel (%p1016) target = $region96
        $region95: #{tpu_custom_call.1} parent=87 // pred_region
          %s1019 = sand.u32 %s37, 1
          %s1020 = scalar_lea.sflag [#allocation12], %s1019
          %s1021 = sand.u32 %s293, 1
          %s1022 = smul.addr %s1021, 16
          %s1023 = scalar_lea.vmem [#allocation11], %s1022
          %1025 = dma.done %s1020, 256
        $region96: #{tpu_custom_call.1} parent=87 // pred_fallthru
          _
        // Predicated region
        $region97: #{tpu_custom_call.1} parent=87 // pred_check
          %p1026 = pneg %p336
        $region98: #{tpu_custom_call.1} parent=87 // pred_check_branch
          %1028 = sbr.rel (%p1026) target = $region100
        $region99: #{tpu_custom_call.1} parent=87 // pred_region
          %s1029 = sand.u32 %s37, 1
          %s1030 = scalar_lea.sflag [#allocation12], %s1029
          %s1031 = sand.u32 %s321, 1
          %s1032 = smul.addr %s1031, 16
          %s1033 = scalar_lea.vmem [#allocation13], %s1032
          %1035 = dma.done %s1030, 256
        $region100: #{tpu_custom_call.1} parent=87 // pred_fallthru
          _
      $region88: #{tpu_custom_call.1} parent=5 // pred_fallthru
        _
    $region6: #{tpu_custom_call.1} parent=1 // loop_footer
      %s35 = sadd.s32 1, %s31
    $region7: #{tpu_custom_call.1} parent=1 // loop_footer_branch
      %30 = sbr.rel target = $region3
    $region8: #{tpu_custom_call.1} parent=1 // loop_exit
      _
    %1036 = vsyncpa [#allocation3], 1
    %s1037 = scalar_lea.sflag [#allocation3], 1
    %1038 = vsyncpa %s1037, 1
    %1039 = vsyncpa [#allocation6], 1
    %s1040 = scalar_lea.sflag [#allocation6], 1
    %1041 = vsyncpa %s1040, 1
    %1042 = vsyncpa [#allocation9], 1
    %1043 = vsyncpa [#allocation4], 1
    %s1044 = scalar_lea.sflag [#allocation4], 1
    %1045 = vsyncpa %s1044, 1
    %1046 = vsyncpa [#allocation12], 1
    %s1047 = scalar_lea.sflag [#allocation12], 1
    %1048 = vsyncpa %s1047, 1

</llo_original>
